<compile_context>
chip_gen: v5e
topology: v5e:2x2
jax: 0.10.0
libtpu: 0.0.40
codegen_flags: <defaults>
</compile_context>

<pallas_src>
import functools
import math

import jax
import jax.numpy as jnp
import numpy as np
from jax import lax
from jax.experimental import pallas as pl
from jax.experimental.pallas import tpu as pltpu

_HP = lax.Precision.HIGH  # bf16x3: ~f32 accuracy, half the passes of HIGHEST


# ------------------------------------------------------------------------------
# pltpu.roll shift-convention probe (run once, outside jit).
def _roll_probe_kernel(x_ref, o_ref):
    o_ref[...] = pltpu.roll(x_ref[...], 1, axis=1)


def _detect_roll_sign():
    base = jnp.tile(jnp.arange(128, dtype=jnp.float32)[None, :], (8, 1))
    rolled = np.asarray(
        pl.pallas_call(_roll_probe_kernel,
                       out_shape=jax.ShapeDtypeStruct((8, 128), jnp.float32))(base))
    ref = np.asarray(base)
    if np.array_equal(rolled, np.roll(ref, 1, axis=1)):
        return 1       # same convention as jnp.roll
    if np.array_equal(rolled, np.roll(ref, -1, axis=1)):
        return -1      # opposite convention
    return 1


# ------------------------------------------------------------------------------
# Fused down_conv + depthwise 9x3x3 aggregation (grid = (B, R)).
#   x block : (1, C, THW)  -- resident per b (same block across r)
#   out     : (1, 1, T, HW)
# Scratches: xr_scr (R, T, HW) holds Wd @ x (computed once per b at r == 0),
#            pad_scr (T+8, LANES) is the zero t-padded, lane-padded plane.
def _agg_kernel(kflat_ref, bias_ref, wd_ref, x_ref, o_ref, xr_scr, pad_scr, *,
                R, T, H, W, LANES, roll_sign):
    r = pl.program_id(1)
    HW = H * W

    @pl.when(r == 0)
    def _():
        # down_conv for all R channels at once on the MXU (never hits HBM).
        xr = lax.dot_general(wd_ref[...], x_ref[0],
                             (((1,), (0,)), ((), ())),
                             preferred_element_type=jnp.float32,
                             precision=_HP)                     # (R, THW)
        for tt in range(T):                                     # static repack
            xr_scr[:, tt, :] = xr[:, tt * HW:(tt + 1) * HW]
        pad_scr[...] = jnp.zeros_like(pad_scr)                  # zero t/lane pad

    # interior of the padded slab for this reduction channel r
    pad_scr[4:4 + T, 0:HW] = xr_scr[r]
    xpad = pad_scr[...]                                         # (T+8, LANES)

    lane = lax.broadcasted_iota(jnp.int32, (1, LANES), 1)
    h_of = lane // W
    w_of = lane % W

    acc = jnp.zeros((T, LANES), jnp.float32)
    for br, d in enumerate((1, 2, 3)):                          # dilation branches
        for kh in range(3):
            for kw in range(3):
                dh = (kh - 1) * d
                dw = (kw - 1) * d
                off = dh * W + dw                               # lane shift of tap
                shift = (-off * roll_sign) % LANES
                xs = xpad if shift == 0 else pltpu.roll(xpad, shift, axis=1)
                if dh != 0 or dw != 0:
                    ok = jnp.logical_and(
                        jnp.logical_and(h_of + dh >= 0, h_of + dh < H),
                        jnp.logical_and(w_of + dw >= 0, w_of + dw < W))
                    xs = jnp.where(ok, xs, 0.0)                 # NaN-safe border
                base = (br * R + r) * 81 + kh * 3 + kw
                for kt in range(9):                             # fully unrolled
                    kv = kflat_ref[base + kt * 9]
                    acc = acc + xs[kt:kt + T, :] * kv

    o_ref[0, 0] = acc[:, 0:HW] + bias_ref[r]


# ------------------------------------------------------------------------------
# Fused correlation + conv_back gate (grid = (B, T)).
#   x block   : (1, C, THW) resident per b  (one DMA per batch element)
#   agg block : (1, R, T, HW) resident per b
#   out block : (1, C, THW) resident per b, flushed after the last t.
def _corr_kernel(w2p_ref, w2_ref, wb_ref, x_ref, agg_ref, o_ref,
                 y_scr, x_scr, o_scr, *, T, HW, R):
    t = pl.program_id(1)

    @pl.when(t == 0)
    def _():
        # down_conv2 for ALL frames of this batch element, once.
        y = lax.dot_general(w2_ref[...], x_ref[0],
                            (((1,), (0,)), ((), ())),
                            preferred_element_type=jnp.float32,
                            precision=_HP)                      # (C, THW)
        for tt in range(T):                                     # static repack
            sl = slice(tt * HW, (tt + 1) * HW)
            y_scr[tt] = y[:, sl]
            x_scr[tt] = x_ref[0, :, sl]

    tn = jnp.minimum(t + 1, T - 1)
    tp = jnp.maximum(t - 1, 0)
    xm = x_scr[t]                                               # (C, HW)
    yn = y_scr[tn]
    yp = y_scr[tp]

    def _branch(y):
        aff = lax.dot_general(xm, y, (((0,), (0,)), ((), ())),
                              preferred_element_type=jnp.float32,
                              precision=_HP)                    # (HW, HW)
        m = jax.nn.sigmoid(aff) - 0.5
        return lax.dot_general(y, m, (((1,), (1,)), ((), ())),
                               preferred_element_type=jnp.float32,
                               precision=_HP)                   # (C, HW)

    feat = _branch(yn) * w2p_ref[0] + _branch(yp) * w2p_ref[1]

    # conv_back (R=2 contraction) as VPU rank-1 updates (no MXU under-fill)
    back = jnp.zeros_like(feat)
    for r in range(R):
        a_r = agg_ref[0, r, pl.ds(t, 1), :]                     # (1, HW)
        back = back + wb_ref[:, r:r + 1] * a_r

    o_scr[t] = feat * (jax.nn.sigmoid(back) - 0.5)

    @pl.when(t == T - 1)
    def _():
        for tt in range(T):                                     # lane-dense store
            o_ref[0, :, tt * HW:(tt + 1) * HW] = o_scr[tt]


# ------------------------------------------------------------------------------
# full forward
def get_correlation_forward(x, params, *, roll_sign=1):
    W2, Wd, Wb = params["W2"], params["Wd"], params["Wb"]
    K, Kbias = params["K"], params["Kbias"]
    w3, w2p = params["w3"], params["w2p"]

    B, C, T, H, Wsp = x.shape
    R = Wd.shape[0]
    HW = H * Wsp
    THW = T * HW
    LANES = max(128, ((HW + 127) // 128) * 128)

    # fold the branch weights / biases on the host (tiny)
    Kp = (w3[:, None, None, None, None] * K).astype(jnp.float32)    # (3,R,9,3,3)
    biasp = jnp.einsum('i,ir->r', w3, Kbias).astype(jnp.float32)    # (R,)

    x_flat = x.reshape(B, C, THW)                                   # free reshape

    cp = pltpu.CompilerParams(dimension_semantics=("parallel", "arbitrary"),
                              vmem_limit_bytes=64 * 1024 * 1024)

    agg = pl.pallas_call(
        functools.partial(_agg_kernel, R=R, T=T, H=H, W=Wsp, LANES=LANES,
                          roll_sign=roll_sign),
        out_shape=jax.ShapeDtypeStruct((B, R, T, HW), jnp.float32),
        grid=(B, R),
        in_specs=[
            pl.BlockSpec(memory_space=pltpu.MemorySpace.SMEM),       # folded taps
            pl.BlockSpec(memory_space=pltpu.MemorySpace.SMEM),       # folded bias
            pl.BlockSpec((R, C), lambda b, r: (0, 0)),               # Wd
            pl.BlockSpec((1, C, THW), lambda b, r: (b, 0, 0)),       # x, per-b resident
        ],
        out_specs=pl.BlockSpec((1, 1, T, HW), lambda b, r: (b, r, 0, 0)),
        scratch_shapes=[pltpu.VMEM((R, T, HW), jnp.float32),         # xr (down_conv)
                        pltpu.VMEM((T + 8, LANES), jnp.float32)],    # padded plane
        compiler_params=cp,
    )(Kp.reshape(-1), biasp, Wd, x_flat)

    out_flat = pl.pallas_call(
        functools.partial(_corr_kernel, T=T, HW=HW, R=R),
        out_shape=jax.ShapeDtypeStruct((B, C, THW), jnp.float32),
        grid=(B, T),
        in_specs=[
            pl.BlockSpec(memory_space=pltpu.MemorySpace.SMEM),       # w2p
            pl.BlockSpec((C, C), lambda b, t: (0, 0)),               # W2
            pl.BlockSpec((C, R), lambda b, t: (0, 0)),               # Wb
            pl.BlockSpec((1, C, THW), lambda b, t: (b, 0, 0)),       # x, per-b resident
            pl.BlockSpec((1, R, T, HW), lambda b, t: (b, 0, 0, 0)),  # agg, per-b resident
        ],
        out_specs=pl.BlockSpec((1, C, THW), lambda b, t: (b, 0, 0)),
        scratch_shapes=[pltpu.VMEM((T, C, HW), jnp.float32),         # y = W2 @ x
                        pltpu.VMEM((T, C, HW), jnp.float32),         # x per frame
                        pltpu.VMEM((T, C, HW), jnp.float32)],        # out per frame
        compiler_params=cp,
    )(w2p, W2, Wb, x_flat, agg)

    return out_flat.reshape(B, C, T, H, Wsp)                         # free reshape


# ------------------------------------------------------------------------------
# pure-JAX reference (mirrors the PyTorch forward)
def reference_forward(x, params):
    W2, Wd, Wb = params["W2"], params["Wd"], params["Wb"]
    K, Kbias = params["K"], params["Kbias"]
    w3, w2p = params["w3"], params["w2p"]
    hp = lax.Precision.HIGHEST
    sg = jax.nn.sigmoid
    R = Wd.shape[0]

    x2 = jnp.einsum('oc,bcthw->bothw', W2, x, precision=hp)
    x2n = jnp.concatenate([x2[:, :, 1:], x2[:, :, -1:]], axis=2)
    x2p = jnp.concatenate([x2[:, :, :1], x2[:, :, :-1]], axis=2)
    aff1 = jnp.einsum('bcthw,bctsd->bthwsd', x, x2n, precision=hp)
    aff2 = jnp.einsum('bcthw,bctsd->bthwsd', x, x2p, precision=hp)
    feats = (jnp.einsum('bctsd,bthwsd->bcthw', x2n, sg(aff1) - 0.5, precision=hp) * w2p[0]
             + jnp.einsum('bctsd,bthwsd->bcthw', x2p, sg(aff2) - 0.5, precision=hp) * w2p[1])

    xr = jnp.einsum('rc,bcthw->brthw', Wd, x, precision=hp)
    agg = jnp.zeros_like(xr)
    for i, d in enumerate((1, 2, 3)):
        conv = lax.conv_general_dilated(
            xr, K[i].reshape(R, 1, 9, 3, 3),
            window_strides=(1, 1, 1),
            padding=((4, 4), (d, d), (d, d)),
            rhs_dilation=(1, d, d),
            dimension_numbers=('NCDHW', 'OIDHW', 'NCDHW'),
            feature_group_count=R,
            precision=hp)
        agg = agg + (conv + Kbias[i].reshape(1, R, 1, 1, 1)) * w3[i]
    back = jnp.einsum('cr,brthw->bcthw', Wb, agg, precision=hp)
    return feats * (sg(back) - 0.5)


if __name__ == "__main__":
    B, C, T, H, W = 2, 32, 4, 8, 8          # channels must be divisible by 16
    R = C // 16
    key = jax.random.PRNGKey(0)
    ks = jax.random.split(key, 6)
    params = dict(
        W2=jax.random.normal(ks[0], (C, C), jnp.float32) / math.sqrt(C),   # down_conv2
        Wd=jax.random.normal(ks[1], (R, C), jnp.float32) / math.sqrt(C),   # down_conv
        Wb=jax.random.normal(ks[2], (C, R), jnp.float32) / math.sqrt(R),   # conv_back
        K=jax.random.normal(ks[3], (3, R, 9, 3, 3), jnp.float32) * 0.1,    # depthwise taps
        Kbias=jax.random.normal(ks[4], (3, R), jnp.float32) * 0.1,         # their biases
        w3=jnp.ones((3,), jnp.float32) / 3.0,                              # self.weights
        w2p=jnp.ones((2,), jnp.float32) / 2.0,                             # self.weights2
    )
    x = jax.random.normal(ks[5], (B, C, T, H, W), jnp.float32)

    roll_sign = _detect_roll_sign()
    fwd = jax.jit(functools.partial(get_correlation_forward, roll_sign=roll_sign))
    out = jax.block_until_ready(fwd(x, params))

    ref = reference_forward(x, params)
    np.testing.assert_allclose(np.asarray(out), np.asarray(ref), rtol=1e-2, atol=1e-2)
    print("KERNEL_OK")
</pallas_src>

<mosaic_0001>
module attributes {stable_mosaic.version = 11 : i64} {
  func.func @_roll_probe_kernel(%arg0: memref<8x128xf32, #tpu.memory_space<vmem>>, %arg1: memref<8x128xf32, #tpu.memory_space<vmem>>) attributes {dimension_semantics = [], scalar_prefetch = 0 : i64, scratch_operands = 0 : i64, tpu.core_type = #tpu.core_type<tc>} {
    %c0 = arith.constant 0 : index
    %c0_0 = arith.constant 0 : index
    %0 = vector.load %arg0[%c0, %c0_0] : memref<8x128xf32, #tpu.memory_space<vmem>>, vector<8x128xf32>
    %c1_i32 = arith.constant 1 : i32
    %1 = tpu.dynamic_rotate %0 by %c1_i32 dim 1 : vector<8x128xf32>, i32 -> vector<8x128xf32>
    %c0_1 = arith.constant 0 : index
    %c0_2 = arith.constant 0 : index
    %2 = vector.load %arg1[%c0_1, %c0_2] : memref<8x128xf32, #tpu.memory_space<vmem>>, vector<8x128xf32>
    tpu.vector_store %arg1[%c0_1, %c0_2], %1 {strides = array<i32>} : memref<8x128xf32, #tpu.memory_space<vmem>>, vector<8x128xf32>,
    return
  }
}

</mosaic_0001>

<llo_original>
// kernel: tpu_custom_call.1
$region0: #{tpu_custom_call.1}
  #allocation0 [shape = 'u32[]', space=smem, size = 0x4, offset = 0x4, fixed_abs, tag = 'smem constant byte address 0x4 - core index']
  #allocation1 [shape = 'u32[72,128]{1,0:T(1,128)}', space=vmem, size = 0x9000, scoped, tag = 'internal scratch']
  %s0 = inlined_call_operand.hbm [shape: f32[8,128], index: 0, kind: input, shape index: {}]
  %s1 = inlined_call_operand.hbm [shape: f32[8,128], index: 1, kind: output, shape index: {}]
  %s2 = sld [smem:[#allocation0]]
  $region18: #{tpu_custom_call.1} parent=0
    _
  %s4 = ssub.s32 1, %s2
  %s5 = scalar_select 0, %s4, %s2
  $region1: #{tpu_custom_call.1} parent=0
    #allocation2 [shape = 'u8[4096]{0}', space=vmem, size = 0x1000, scoped, tag = 'input window, operand 0, single buffered']
    #allocation3 [shape = 's32[1]{0}', space=sflag, size = 0x4, scoped, tag = 'scoped memory for tpu_custom_call.1']
    #allocation4 [shape = 's32[1]{0}', space=sflag, size = 0x4, scoped, tag = 'scoped memory for tpu_custom_call.1']
    #allocation5 [shape = 'u8[4096]{0}', space=vmem, size = 0x1000, scoped, tag = 'output window, operand 0, single buffered']
    %6 = vsyncpa [#allocation3], 0
    %7 = vsyncpa [#allocation4], 0
    // Predicated region
    $region2: #{tpu_custom_call.1} parent=1 // pred_check
      _
    $region3: #{tpu_custom_call.1} parent=1 // pred_check_branch
      %9 = sbr.rel (0) target = $region5
    $region4: #{tpu_custom_call.1} parent=1 // pred_region
      %11 = vsyncadd [#allocation3], 0
      %s13 = sshll.u32 %s0, 4
      %s14 = int_to_ptr.hbm [resolvable:$true] %s13
      %s15 = sshll.u32 [#allocation2], 4
      %s16 = int_to_ptr.vmem [resolvable:$true] %s15
      %18 = dma.hbm_to_vmem [thread:$0]  %s14, 128, %s16, [#allocation3]
    $region5: #{tpu_custom_call.1} parent=1 // pred_fallthru
      _
    // Predicated region
    $region6: #{tpu_custom_call.1} parent=1 // pred_check
      _
    $region7: #{tpu_custom_call.1} parent=1 // pred_check_branch
      %20 = sbr.rel (0) target = $region9
    $region8: #{tpu_custom_call.1} parent=1 // pred_region
      %22 = dma.done [#allocation3], 128
    $region9: #{tpu_custom_call.1} parent=1 // pred_fallthru
      _
    %v23 = vld [vmem:[#allocation2] sm:$0xff]
    %24 = vrot.lane.b32.xlu0 %v23, 1
    %v25 = vpop.permute.xlu0 %24
    %26 = vst [vmem:[#allocation5] sm:$0xff] %v25
    // Predicated region
    $region10: #{tpu_custom_call.1} parent=1 // pred_check
      _
    $region11: #{tpu_custom_call.1} parent=1 // pred_check_branch
      %28 = sbr.rel (0) target = $region13
    $region12: #{tpu_custom_call.1} parent=1 // pred_region
      %30 = vsyncadd [#allocation4], 0
      %s32 = sshll.u32 [#allocation5], 4
      %s33 = int_to_ptr.vmem [resolvable:$true] %s32
      %s34 = sshll.u32 %s1, 4
      %s35 = int_to_ptr.hbm [resolvable:$true] %s34
      %37 = dma.vmem_to_hbm [thread:$0]  %s33, 128, %s35, [#allocation4]
    $region13: #{tpu_custom_call.1} parent=1 // pred_fallthru
      _
    // Predicated region
    $region14: #{tpu_custom_call.1} parent=1 // pred_check
      _
    $region15: #{tpu_custom_call.1} parent=1 // pred_check_branch
      %39 = sbr.rel (0) target = $region17
    $region16: #{tpu_custom_call.1} parent=1 // pred_region
      %41 = dma.done [#allocation4], 128
    $region17: #{tpu_custom_call.1} parent=1 // pred_fallthru
      _
    %42 = vsyncpa [#allocation3], 1
    %43 = vsyncpa [#allocation4], 1

</llo_original>
